<compile_context>
chip_gen: v6e
topology: v6e:2x2x1
jax: 0.10.0
libtpu: 0.0.40
codegen_flags: <defaults>
</compile_context>

<pallas_src>
import jax
import jax.numpy as jnp
from jax import lax
from jax.experimental import pallas as pl
from jax.experimental.pallas import tpu as pltpu


def gru_topk_kernel(node_ref, node_t_ref, mask_col_ref, mask_row_ref,
                    hist_ref, scorer_col_ref, scorer_row_ref,
                    w_ref, u01_ref, u2_ref, b_ref, out_ref):
    R, I = node_ref.shape
    O = hist_ref.shape[1]

    # ---- TopK scoring -------------------------------------------------------
    scorer_row = scorer_row_ref[...]                        # (1, I), lane-major
    inv_norm = 1.0 / jnp.sqrt(jnp.sum(scorer_row * scorer_row))
    scorer_row_n = scorer_row * inv_norm                    # fold 1/||scorer|| (I mults)
    scorer_col_n = scorer_col_ref[...] * inv_norm           # (I, 1)

    node = node_ref[...]                                    # (R, I)
    node_t = node_t_ref[...]                                # (I, R)

    # Masked scores in both orientations via plain matmuls (no in-kernel transpose).
    scores_row = (jnp.dot(scorer_row_n, node_t, preferred_element_type=jnp.float32)
                  + mask_row_ref[...])                      # (1, R)
    scores_col = (jnp.dot(node, scorer_col_n, preferred_element_type=jnp.float32)
                  + mask_col_ref[...])                      # (R, 1)

    # ---- One-shot rank-based top-k selection --------------------------------
    # beats[i, j] = 1 iff node j outranks node i (higher score, or equal score
    # with lower index).  rank[i] = sum_j beats[i, j] is node i's position in
    # the stable descending order used by lax.top_k / torch.topk.
    row_idx = lax.broadcasted_iota(jnp.int32, (R, R), 0)
    col_idx = lax.broadcasted_iota(jnp.int32, (R, R), 1)
    gt = scores_row > scores_col                            # [i, j] = s_j > s_i
    eq = scores_row == scores_col                           # [i, j] = s_j == s_i
    beats = (row_idx != col_idx) & (gt | (eq & (col_idx < row_idx)))
    rank = jnp.sum(beats.astype(jnp.int32), axis=1, keepdims=True)      # (R, 1)

    # sel[i, c] = tanh(score_i) iff node i has rank c (< O), else 0, so that
    # node_t @ sel == (node_embs[topk_idx] * tanh(topk_vals)).T .
    # TODO(synk): assumes >= O rows with finite (non -inf masked) scores; the
    # PyTorch TopK instead drops masked nodes and pads with the last valid index.
    col_iota_ro = lax.broadcasted_iota(jnp.int32, (R, O), 1)
    sel = jnp.where(rank == col_iota_ro, jnp.tanh(scores_col), 0.0)     # (R, O)
    x_topk = jnp.dot(node_t, sel, preferred_element_type=jnp.float32)   # (I, O)

    # ---- Fused GRU gates -----------------------------------------------------
    h = hist_ref[...]                                       # (I, O)
    b = b_ref[...]                                          # (3I, O)
    wx = jnp.dot(w_ref[...], x_topk, preferred_element_type=jnp.float32)   # (3I, O)
    uh = jnp.dot(u01_ref[...], h, preferred_element_type=jnp.float32)      # (2I, O)

    gates = jax.nn.sigmoid(wx[:2 * I] + uh + b[:2 * I])     # (2I, O): [update | reset]
    update = gates[:I]
    reset = gates[I:]

    h_cap = jnp.tanh(wx[2 * I:]
                     + jnp.dot(u2_ref[...], reset * h,
                               preferred_element_type=jnp.float32)
                     + b[2 * I:])

    # TODO(synk): output kept as (I, O) (O=16 < 128 lanes => masked stores); a
    # lane-dense (1, I*O) layout would need in-kernel reshapes of 5 tiny tensors
    # and is not worth it at this size.
    out_ref[...] = (1.0 - update) * h + update * h_cap


def gru_topk(node_embs, mask, history, scorer, W, U, B):
    """node_embs (R,I), mask (R,1), history (I,O), scorer (I,1),
    W,U (3,I,I), B (3,I,O)  ->  (I,O)."""
    R, I = node_embs.shape
    O = history.shape[1]

    # Layout plumbing done once in the wrapper (all tensors are tiny):
    node_t = node_embs.T                      # (I, R) -> plain matmuls in-kernel
    mask_row = mask.reshape(1, R)             # (1, R)
    scorer_row = scorer.reshape(1, I)         # (1, I)
    w_flat = W.reshape(3 * I, I)              # fused W matmul
    u01 = U[:2].reshape(2 * I, I)             # fused update/reset U matmul
    u2 = U[2]
    b_flat = B.reshape(3 * I, O)

    vmem = pl.BlockSpec(memory_space=pltpu.MemorySpace.VMEM)
    return pl.pallas_call(
        gru_topk_kernel,
        out_shape=jax.ShapeDtypeStruct((I, O), jnp.float32),
        in_specs=[vmem] * 11,
        out_specs=vmem,
    )(node_embs, node_t, mask, mask_row, history, scorer, scorer_row,
      w_flat, u01, u2, b_flat)


def gru_topk_ref(node_embs, mask, history, scorer, W, U, B):
    """Pure-JAX reference mirroring the PyTorch module."""
    k = history.shape[1]
    scores = node_embs @ scorer / jnp.linalg.norm(scorer) + mask   # (R, 1)
    vals, idx = lax.top_k(scores[:, 0], k)
    x_topk = (node_embs[idx] * jnp.tanh(vals)[:, None]).T          # (I, O)
    sig = jax.nn.sigmoid
    update = sig(W[0] @ x_topk + U[0] @ history + B[0])
    reset = sig(W[1] @ x_topk + U[1] @ history + B[1])
    h_cap = jnp.tanh(W[2] @ x_topk + U[2] @ (reset * history) + B[2])
    return (1.0 - update) * history + update * h_cap


if __name__ == "__main__":
    R, I, O = 64, 32, 16     # R nodes, input_dim I, output_dim (= top-k) O

    key = jax.random.PRNGKey(0)
    ks = jax.random.split(key, 6)

    stdv_w = 1.0 / jnp.sqrt(jnp.float32(I))
    node_embs = jax.random.normal(ks[0], (R, I), jnp.float32)
    history = jax.random.normal(ks[1], (I, O), jnp.float32)
    mask = jnp.zeros((R, 1), jnp.float32)            # all nodes valid
    scorer = jax.random.uniform(ks[2], (I, 1), jnp.float32, -stdv_w, stdv_w)
    W = jax.random.uniform(ks[3], (3, I, I), jnp.float32, -stdv_w, stdv_w)
    U = jax.random.uniform(ks[4], (3, I, I), jnp.float32, -stdv_w, stdv_w)
    B = jax.random.uniform(ks[5], (3, I, O), jnp.float32, -stdv_w, stdv_w)

    out = gru_topk(node_embs, mask, history, scorer, W, U, B)
    jax.block_until_ready(out)

    ref = gru_topk_ref(node_embs, mask, history, scorer, W, U, B)
    assert out.shape == (I, O)
    assert jnp.allclose(out, ref, rtol=1e-5, atol=1e-5), (
        f"max abs err {jnp.max(jnp.abs(out - ref))}")

    print("KERNEL_OK")
</pallas_src>

<mosaic_0001>
module attributes {stable_mosaic.version = 11 : i64} {
  func.func @gru_topk_kernel(%arg0: memref<64x32xf32, #tpu.memory_space<vmem>>, %arg1: memref<32x64xf32, #tpu.memory_space<vmem>>, %arg2: memref<64x1xf32, #tpu.memory_space<vmem>>, %arg3: memref<1x64xf32, #tpu.memory_space<vmem>>, %arg4: memref<32x16xf32, #tpu.memory_space<vmem>>, %arg5: memref<32x1xf32, #tpu.memory_space<vmem>>, %arg6: memref<1x32xf32, #tpu.memory_space<vmem>>, %arg7: memref<96x32xf32, #tpu.memory_space<vmem>>, %arg8: memref<64x32xf32, #tpu.memory_space<vmem>>, %arg9: memref<32x32xf32, #tpu.memory_space<vmem>>, %arg10: memref<96x16xf32, #tpu.memory_space<vmem>>, %arg11: memref<32x16xf32, #tpu.memory_space<vmem>>) attributes {dimension_semantics = [], scalar_prefetch = 0 : i64, scratch_operands = 0 : i64, tpu.core_type = #tpu.core_type<tc>} {
    %c0 = arith.constant 0 : index
    %c0_0 = arith.constant 0 : index
    %0 = vector.load %arg6[%c0, %c0_0] : memref<1x32xf32, #tpu.memory_space<vmem>>, vector<1x32xf32>
    %1 = arith.mulf %0, %0 : vector<1x32xf32>
    %2 = vector.shape_cast %1 : vector<1x32xf32> to vector<1x1x32xf32>
    %cst = arith.constant dense<0.000000e+00> : vector<1xf32>
    %3 = vector.multi_reduction <add>, %2, %cst [1, 2] : vector<1x1x32xf32> to vector<1xf32>
    %4 = vector.shape_cast %3 : vector<1xf32> to vector<1x1x1xf32>
    %5 = vector.extract %4[0, 0, 0] : f32 from vector<1x1x1xf32>
    %6 = math.sqrt %5 : f32
    %cst_1 = arith.constant 1.000000e+00 : f32
    %7 = arith.divf %cst_1, %6 : f32
    %8 = vector.broadcast %7 : f32 to vector<1x32xf32>
    %9 = arith.mulf %0, %8 : vector<1x32xf32>
    %c0_2 = arith.constant 0 : index
    %c0_3 = arith.constant 0 : index
    %10 = vector.load %arg5[%c0_2, %c0_3] : memref<32x1xf32, #tpu.memory_space<vmem>>, vector<32x1xf32>
    %11 = vector.broadcast %7 : f32 to vector<32x1xf32>
    %12 = arith.mulf %10, %11 : vector<32x1xf32>
    %c0_4 = arith.constant 0 : index
    %c0_5 = arith.constant 0 : index
    %13 = vector.load %arg0[%c0_4, %c0_5] : memref<64x32xf32, #tpu.memory_space<vmem>>, vector<64x32xf32>
    %c0_6 = arith.constant 0 : index
    %c0_7 = arith.constant 0 : index
    %14 = vector.load %arg1[%c0_6, %c0_7] : memref<32x64xf32, #tpu.memory_space<vmem>>, vector<32x64xf32>
    %cst_8 = arith.constant dense<0.000000e+00> : vector<1x64xf32>
    %15 = tpu.matmul %9, %14, %cst_8 {dimension_numbers = #tpu.dot_dimension_numbers<[1], [0], [0], [1], [0, 0, 1, 1], [], []>} : vector<1x32xf32>, vector<32x64xf32>, vector<1x64xf32> -> vector<1x64xf32>
    %c0_9 = arith.constant 0 : index
    %c0_10 = arith.constant 0 : index
    %16 = vector.load %arg3[%c0_9, %c0_10] : memref<1x64xf32, #tpu.memory_space<vmem>>, vector<1x64xf32>
    %17 = arith.addf %15, %16 : vector<1x64xf32>
    %cst_11 = arith.constant dense<0.000000e+00> : vector<64x1xf32>
    %18 = tpu.matmul %13, %12, %cst_11 {dimension_numbers = #tpu.dot_dimension_numbers<[1], [0], [0], [1], [0, 0, 1, 1], [], []>} : vector<64x32xf32>, vector<32x1xf32>, vector<64x1xf32> -> vector<64x1xf32>
    %c0_12 = arith.constant 0 : index
    %c0_13 = arith.constant 0 : index
    %19 = vector.load %arg2[%c0_12, %c0_13] : memref<64x1xf32, #tpu.memory_space<vmem>>, vector<64x1xf32>
    %20 = arith.addf %18, %19 : vector<64x1xf32>
    %21 = tpu.iota {dimensions = array<i32: 0>} : vector<64x64xi32>
    %22 = tpu.iota {dimensions = array<i32: 1>} : vector<64x64xi32>
    %23 = vector.broadcast %17 : vector<1x64xf32> to vector<64x64xf32>
    %24 = vector.broadcast %20 : vector<64x1xf32> to vector<64x64xf32>
    %25 = arith.cmpf ogt, %23, %24 : vector<64x64xf32>
    %26 = vector.broadcast %17 : vector<1x64xf32> to vector<64x64xf32>
    %27 = vector.broadcast %20 : vector<64x1xf32> to vector<64x64xf32>
    %28 = arith.cmpf oeq, %26, %27 : vector<64x64xf32>
    %29 = arith.cmpi ne, %21, %22 : vector<64x64xi32>
    %30 = arith.cmpi slt, %22, %21 : vector<64x64xi32>
    %31 = arith.andi %28, %30 : vector<64x64xi1>
    %32 = arith.ori %25, %31 : vector<64x64xi1>
    %33 = arith.andi %29, %32 : vector<64x64xi1>
    %34 = arith.extui %33 : vector<64x64xi1> to vector<64x64xi32>
    %cst_14 = arith.constant dense<0> : vector<64xi32>
    %35 = vector.multi_reduction <add>, %34, %cst_14 [1] : vector<64x64xi32> to vector<64xi32>
    %36 = vector.shape_cast %35 : vector<64xi32> to vector<64x1xi32>
    %37 = tpu.iota {dimensions = array<i32: 1>} : vector<64x16xi32>
    %38 = vector.broadcast %36 : vector<64x1xi32> to vector<64x16xi32>
    %39 = arith.cmpi eq, %38, %37 : vector<64x16xi32>
    %40 = math.tanh %20 : vector<64x1xf32>
    %cst_15 = arith.constant 0.000000e+00 : f32
    %41 = vector.shape_cast %40 : vector<64x1xf32> to vector<64x1xf32>
    %42 = vector.broadcast %41 : vector<64x1xf32> to vector<64x16xf32>
    %43 = vector.broadcast %cst_15 : f32 to vector<64x16xf32>
    %44 = arith.select %39, %42, %43 : vector<64x16xi1>, vector<64x16xf32>
    %cst_16 = arith.constant dense<0.000000e+00> : vector<32x16xf32>
    %45 = tpu.matmul %14, %44, %cst_16 {dimension_numbers = #tpu.dot_dimension_numbers<[1], [0], [0], [1], [0, 0, 1, 1], [], []>} : vector<32x64xf32>, vector<64x16xf32>, vector<32x16xf32> -> vector<32x16xf32>
    %c0_17 = arith.constant 0 : index
    %c0_18 = arith.constant 0 : index
    %46 = vector.load %arg4[%c0_17, %c0_18] : memref<32x16xf32, #tpu.memory_space<vmem>>, vector<32x16xf32>
    %c0_19 = arith.constant 0 : index
    %c0_20 = arith.constant 0 : index
    %47 = vector.load %arg10[%c0_19, %c0_20] : memref<96x16xf32, #tpu.memory_space<vmem>>, vector<96x16xf32>
    %c0_21 = arith.constant 0 : index
    %c0_22 = arith.constant 0 : index
    %48 = vector.load %arg7[%c0_21, %c0_22] : memref<96x32xf32, #tpu.memory_space<vmem>>, vector<96x32xf32>
    %cst_23 = arith.constant dense<0.000000e+00> : vector<96x16xf32>
    %49 = tpu.matmul %48, %45, %cst_23 {dimension_numbers = #tpu.dot_dimension_numbers<[1], [0], [0], [1], [0, 0, 1, 1], [], []>} : vector<96x32xf32>, vector<32x16xf32>, vector<96x16xf32> -> vector<96x16xf32>
    %c0_24 = arith.constant 0 : index
    %c0_25 = arith.constant 0 : index
    %50 = vector.load %arg8[%c0_24, %c0_25] : memref<64x32xf32, #tpu.memory_space<vmem>>, vector<64x32xf32>
    %cst_26 = arith.constant dense<0.000000e+00> : vector<64x16xf32>
    %51 = tpu.matmul %50, %46, %cst_26 {dimension_numbers = #tpu.dot_dimension_numbers<[1], [0], [0], [1], [0, 0, 1, 1], [], []>} : vector<64x32xf32>, vector<32x16xf32>, vector<64x16xf32> -> vector<64x16xf32>
    %52 = vector.extract_strided_slice %49 {offsets = [0, 0], sizes = [64, 16], strides = [1, 1]} : vector<96x16xf32> to vector<64x16xf32>
    %53 = arith.addf %52, %51 : vector<64x16xf32>
    %54 = vector.extract_strided_slice %47 {offsets = [0, 0], sizes = [64, 16], strides = [1, 1]} : vector<96x16xf32> to vector<64x16xf32>
    %55 = arith.addf %53, %54 : vector<64x16xf32>
    %56 = arith.negf %55 : vector<64x16xf32>
    %57 = math.exp %56 : vector<64x16xf32>
    %cst_27 = arith.constant 1.000000e+00 : f32
    %58 = vector.broadcast %cst_27 : f32 to vector<64x16xf32>
    %59 = arith.addf %58, %57 : vector<64x16xf32>
    %60 = arith.divf %58, %59 : vector<64x16xf32>
    %61 = vector.extract_strided_slice %60 {offsets = [0, 0], sizes = [32, 16], strides = [1, 1]} : vector<64x16xf32> to vector<32x16xf32>
    %62 = vector.extract_strided_slice %60 {offsets = [32, 0], sizes = [32, 16], strides = [1, 1]} : vector<64x16xf32> to vector<32x16xf32>
    %63 = vector.extract_strided_slice %49 {offsets = [64, 0], sizes = [32, 16], strides = [1, 1]} : vector<96x16xf32> to vector<32x16xf32>
    %c0_28 = arith.constant 0 : index
    %c0_29 = arith.constant 0 : index
    %64 = vector.load %arg9[%c0_28, %c0_29] : memref<32x32xf32, #tpu.memory_space<vmem>>, vector<32x32xf32>
    %65 = arith.mulf %62, %46 : vector<32x16xf32>
    %cst_30 = arith.constant dense<0.000000e+00> : vector<32x16xf32>
    %66 = tpu.matmul %64, %65, %cst_30 {dimension_numbers = #tpu.dot_dimension_numbers<[1], [0], [0], [1], [0, 0, 1, 1], [], []>} : vector<32x32xf32>, vector<32x16xf32>, vector<32x16xf32> -> vector<32x16xf32>
    %67 = arith.addf %63, %66 : vector<32x16xf32>
    %68 = vector.extract_strided_slice %47 {offsets = [64, 0], sizes = [32, 16], strides = [1, 1]} : vector<96x16xf32> to vector<32x16xf32>
    %69 = arith.addf %67, %68 : vector<32x16xf32>
    %70 = math.tanh %69 : vector<32x16xf32>
    %cst_31 = arith.constant 1.000000e+00 : f32
    %71 = vector.broadcast %cst_31 : f32 to vector<32x16xf32>
    %72 = arith.subf %71, %61 : vector<32x16xf32>
    %73 = arith.mulf %72, %46 : vector<32x16xf32>
    %74 = arith.mulf %61, %70 : vector<32x16xf32>
    %75 = arith.addf %73, %74 : vector<32x16xf32>
    %c0_32 = arith.constant 0 : index
    %c0_33 = arith.constant 0 : index
    %76 = vector.load %arg11[%c0_32, %c0_33] : memref<32x16xf32, #tpu.memory_space<vmem>>, vector<32x16xf32>
    tpu.vector_store %arg11[%c0_32, %c0_33], %75 {strides = array<i32>} : memref<32x16xf32, #tpu.memory_space<vmem>>, vector<32x16xf32>,
    return
  }
}

</mosaic_0001>

<llo_original>
// kernel: tpu_custom_call.1
$region0: #{tpu_custom_call.1}
  #allocation0 [shape = 'u32[]', space=smem, size = 0x4, offset = 0x4, fixed_abs, tag = 'smem constant byte address 0x4 - core index']
  #allocation1 [shape = 'u32[144,128]{1,0:T(1,128)}', space=vmem, size = 0x12000, scoped, tag = 'internal scratch']
  %s0 = inlined_call_operand.vmem [shape: f32[64,32], index: 0, kind: input, shape index: {}]
  %s1 = inlined_call_operand.vmem [shape: f32[32,64], index: 1, kind: input, shape index: {}]
  %s2 = inlined_call_operand.vmem [shape: f32[64,1], index: 2, kind: input, shape index: {}]
  %s3 = inlined_call_operand.vmem [shape: f32[1,64], index: 3, kind: input, shape index: {}]
  %s4 = inlined_call_operand.vmem [shape: f32[32,16], index: 4, kind: input, shape index: {}]
  %s5 = inlined_call_operand.vmem [shape: f32[32,1], index: 5, kind: input, shape index: {}]
  %s6 = inlined_call_operand.vmem [shape: f32[1,32], index: 6, kind: input, shape index: {}]
  %s7 = inlined_call_operand.vmem [shape: f32[96,32], index: 7, kind: input, shape index: {}]
  %s8 = inlined_call_operand.vmem [shape: f32[64,32], index: 8, kind: input, shape index: {}]
  %s9 = inlined_call_operand.vmem [shape: f32[32,32], index: 9, kind: input, shape index: {}]
  %s10 = inlined_call_operand.vmem [shape: f32[96,16], index: 10, kind: input, shape index: {}]
  %s11 = inlined_call_operand.vmem [shape: f32[32,16], index: 11, kind: output, shape index: {}]
  %s12 = sld [smem:[#allocation0]]
  $region54: #{tpu_custom_call.1} parent=0
    _
  %s14 = ssub.s32 1, %s12
  %s15 = scalar_select 0, %s14, %s12
  // Predicated region
  $region2: #{tpu_custom_call.1} parent=0 // pred_check
    _
  $region3: #{tpu_custom_call.1} parent=0 // pred_check_branch
    %17 = sbr.rel (0) target = $region5
  $region4: #{tpu_custom_call.1} parent=0 // pred_region
    _
  $region5: #{tpu_custom_call.1} parent=0 // pred_fallthru
    _
  // Predicated region
  $region6: #{tpu_custom_call.1} parent=0 // pred_check
    _
  $region7: #{tpu_custom_call.1} parent=0 // pred_check_branch
    %19 = sbr.rel (0) target = $region9
  $region8: #{tpu_custom_call.1} parent=0 // pred_region
    _
  $region9: #{tpu_custom_call.1} parent=0 // pred_fallthru
    _
  // Predicated region
  $region10: #{tpu_custom_call.1} parent=0 // pred_check
    _
  $region11: #{tpu_custom_call.1} parent=0 // pred_check_branch
    %21 = sbr.rel (0) target = $region13
  $region12: #{tpu_custom_call.1} parent=0 // pred_region
    _
  $region13: #{tpu_custom_call.1} parent=0 // pred_fallthru
    _
  // Predicated region
  $region14: #{tpu_custom_call.1} parent=0 // pred_check
    _
  $region15: #{tpu_custom_call.1} parent=0 // pred_check_branch
    %23 = sbr.rel (0) target = $region17
  $region16: #{tpu_custom_call.1} parent=0 // pred_region
    _
  $region17: #{tpu_custom_call.1} parent=0 // pred_fallthru
    _
  // Predicated region
  $region18: #{tpu_custom_call.1} parent=0 // pred_check
    _
  $region19: #{tpu_custom_call.1} parent=0 // pred_check_branch
    %25 = sbr.rel (0) target = $region21
  $region20: #{tpu_custom_call.1} parent=0 // pred_region
    _
  $region21: #{tpu_custom_call.1} parent=0 // pred_fallthru
    _
  // Predicated region
  $region22: #{tpu_custom_call.1} parent=0 // pred_check
    _
  $region23: #{tpu_custom_call.1} parent=0 // pred_check_branch
    %27 = sbr.rel (0) target = $region25
  $region24: #{tpu_custom_call.1} parent=0 // pred_region
    _
  $region25: #{tpu_custom_call.1} parent=0 // pred_fallthru
    _
  // Predicated region
  $region26: #{tpu_custom_call.1} parent=0 // pred_check
    _
  $region27: #{tpu_custom_call.1} parent=0 // pred_check_branch
    %29 = sbr.rel (0) target = $region29
  $region28: #{tpu_custom_call.1} parent=0 // pred_region
    _
  $region29: #{tpu_custom_call.1} parent=0 // pred_fallthru
    _
  // Predicated region
  $region30: #{tpu_custom_call.1} parent=0 // pred_check
    _
  $region31: #{tpu_custom_call.1} parent=0 // pred_check_branch
    %31 = sbr.rel (0) target = $region33
  $region32: #{tpu_custom_call.1} parent=0 // pred_region
    _
  $region33: #{tpu_custom_call.1} parent=0 // pred_fallthru
    _
  // Predicated region
  $region34: #{tpu_custom_call.1} parent=0 // pred_check
    _
  $region35: #{tpu_custom_call.1} parent=0 // pred_check_branch
    %33 = sbr.rel (0) target = $region37
  $region36: #{tpu_custom_call.1} parent=0 // pred_region
    _
  $region37: #{tpu_custom_call.1} parent=0 // pred_fallthru
    _
  // Predicated region
  $region38: #{tpu_custom_call.1} parent=0 // pred_check
    _
  $region39: #{tpu_custom_call.1} parent=0 // pred_check_branch
    %35 = sbr.rel (0) target = $region41
  $region40: #{tpu_custom_call.1} parent=0 // pred_region
    _
  $region41: #{tpu_custom_call.1} parent=0 // pred_fallthru
    _
  // Predicated region
  $region42: #{tpu_custom_call.1} parent=0 // pred_check
    _
  $region43: #{tpu_custom_call.1} parent=0 // pred_check_branch
    %37 = sbr.rel (0) target = $region45
  $region44: #{tpu_custom_call.1} parent=0 // pred_region
    _
  $region45: #{tpu_custom_call.1} parent=0 // pred_fallthru
    _
  %v38 = vld [vmem:[%s6] sm:$0x1]
  %v39 = vmul.f32 %v38, %v38
  %vm40 = vcmask 253952
  %v41 = vsel %vm40, %v39, 0.0
  %42 = vadd.xlane.f32.xlu0 %v41
  %v43 = vpop.xlane.xlu0 %42
  %v44 = vrot.slane %v43, 4
  %v45 = vadd.f32 %v43, %v44
  %v46 = vrot.slane %v45, 2
  %v47 = vadd.f32 %v45, %v46
  %v48 = vrot.slane %v47, 1
  %v49 = vadd.f32 %v47, %v48
  %s50 = vtos %v49
  %v51 = vstv %s50
  %v52 = vrsqrt.pop %v51
  %v53 = vmul.f32 %v51, %v52
  %vm54 = vcmp.eq.f32.partialorder %v51, inf
  %v55 = vsel %vm54, %v51, %v53
  %vm56 = vcmp.eq.f32.partialorder %v51, 0.0
  %v57 = vand.u32 %v51, 2147483648
  %v58 = vsel %vm56, %v57, %v55
  %s59 = vtos %v58
  %v60 = vstv %s59
  %v61 = vrcp.pop %v60
  %s62 = vtos %v61
  %v63 = vstv %s62
  %v64 = vmul.f32 %v38, %v63
  %v65 = vld [vmem:[%s5] sm:$0xff]
  %v66 = vld [vmem:[%s5 + $0x8] sm:$0xff]
  %v67 = vld [vmem:[%s5 + $0x10] sm:$0xff]
  %v68 = vld [vmem:[%s5 + $0x18] sm:$0xff]
  %v69 = vmul.f32 %v65, %v63
  %v70 = vmul.f32 %v66, %v63
  %v71 = vmul.f32 %v67, %v63
  %v72 = vmul.f32 %v68, %v63
  %v73 = vld [vmem:[%s0] sm:$0xff]
  %v74 = vld [vmem:[%s0 + $0x8] sm:$0xff]
  %v75 = vld [vmem:[%s0 + $0x10] sm:$0xff]
  %v76 = vld [vmem:[%s0 + $0x18] sm:$0xff]
  %v77 = vld [vmem:[%s0 + $0x20] sm:$0xff]
  %v78 = vld [vmem:[%s0 + $0x28] sm:$0xff]
  %v79 = vld [vmem:[%s0 + $0x30] sm:$0xff]
  %v80 = vld [vmem:[%s0 + $0x38] sm:$0xff]
  %v81 = vld [vmem:[%s1] sm:$0xff]
  %v82 = vld [vmem:[%s1 + $0x8] sm:$0xff]
  %v83 = vld [vmem:[%s1 + $0x10] sm:$0xff]
  %v84 = vld [vmem:[%s1 + $0x18] sm:$0xff]
  %v85 = vld [vmem:[%s3] sm:$0x1]
  %vm86 = vcmask 261120
  %v88 = vsel %vm86, %v64, 0
  %90 = vmatprep.subr.mxu0 0.0
  %91 = vmatpush1.msra.mxu0 0.0
  %92 = vmatprep.subr.mxu0 0.0
  %93 = vmatpush1.msra.mxu0 0.0
  %94 = vmatprep.subr.mxu0 0.0
  %95 = vmatpush1.msra.mxu0 0.0
  %96 = vmatprep.subr.mxu0 0.0
  %97 = vmatpush1.msra.mxu0 0.0
  %98 = vmatprep.subr.mxu0 0.0
  %99 = vmatpush1.msra.mxu0 0.0
  %100 = vmatprep.subr.mxu0 0.0
  %101 = vmatpush1.msra.mxu0 0.0
  %102 = vmatprep.subr.mxu0 0.0
  %103 = vmatpush1.msra.mxu0 0.0
  %104 = vmatprep.subr.mxu0 0.0
  %105 = vmatpush1.msra.mxu0 0.0
  %106 = vmatprep.subr.mxu0 0.0
  %107 = vmatpush1.msra.mxu0 0.0
  %108 = vmatprep.subr.mxu0 0.0
  %109 = vmatpush1.msra.mxu0 0.0
  %110 = vmatprep.subr.mxu0 0.0
  %111 = vmatpush1.msra.mxu0 0.0
  %112 = vmatprep.subr.mxu0 0.0
  %113 = vmatpush1.msra.mxu0 0.0
  %114 = vmatprep.subr.mxu0 0.0
  %115 = vmatpush1.msra.mxu0 %v84
  %116 = vmatprep.subr.mxu0 0.0
  %117 = vmatpush1.msra.mxu0 %v83
  %118 = vmatprep.subr.mxu0 0.0
  %119 = vmatpush1.msra.mxu0 %v82
  %120 = vmatprep.subr.mxu0 0.0
  %121 = vmatpush1.msra.mxu0 %v81
  %122 = vmatprep.subr.mxu0 0.0
  %123 = vmatpush2.msra.mxu0 0.0
  %124 = vmatprep.subr.mxu0 0.0
  %125 = vmatpush2.msra.mxu0 0.0
  %126 = vmatprep.subr.mxu0 0.0
  %127 = vmatpush2.msra.mxu0 0.0
  %128 = vmatprep.subr.mxu0 0.0
  %129 = vmatpush2.msra.mxu0 0.0
  %130 = vmatprep.subr.mxu0 0.0
  %131 = vmatpush2.msra.mxu0 0.0
  %132 = vmatprep.subr.mxu0 0.0
  %133 = vmatpush2.msra.mxu0 0.0
  %134 = vmatprep.subr.mxu0 0.0
  %135 = vmatpush2.msra.mxu0 0.0
  %136 = vmatprep.subr.mxu0 0.0
  %137 = vmatpush2.msra.mxu0 0.0
  %138 = vmatprep.subr.mxu0 0.0
  %139 = vmatpush2.msra.mxu0 0.0
  %140 = vmatprep.subr.mxu0 0.0
  %141 = vmatpush2.msra.mxu0 0.0
  %142 = vmatprep.subr.mxu0 0.0
  %143 = vmatpush2.msra.mxu0 0.0
  %144 = vmatprep.subr.mxu0 0.0
  %145 = vmatpush2.msra.mxu0 0.0
  %146 = vmatprep.subr.mxu0 0.0
  %147 = vmatpush2.msra.mxu0 0.0
  %148 = vmatprep.subr.mxu0 0.0
  %149 = vmatpush2.msra.mxu0 0.0
  %150 = vmatprep.subr.mxu0 0.0
  %151 = vmatpush2.msra.mxu0 0.0
  %152 = vmatprep.subr.mxu0 0.0
  %153 = vmatpush2.msra.mxu0 0.0
  %154 = vmatprep.mubr.f32.mxu0 0.0
  %155 = vmatmul.mubr.f32.gmra.mxu0 %v88
  %v156 = vpop.f32.mrf.mxu0
  %v157 = vadd.f32 %v85, %v156
  %v158 = vpop.f32.mrf.mxu0
  %159 = vdwg.mxu0
  %v160 = vld [vmem:[%s2] sm:$0xff]
  %v161 = vld [vmem:[%s2 + $0x8] sm:$0xff]
  %v162 = vld [vmem:[%s2 + $0x10] sm:$0xff]
  %v163 = vld [vmem:[%s2 + $0x18] sm:$0xff]
  %v164 = vld [vmem:[%s2 + $0x20] sm:$0xff]
  %v165 = vld [vmem:[%s2 + $0x28] sm:$0xff]
  %v166 = vld [vmem:[%s2 + $0x30] sm:$0xff]
  %v167 = vld [vmem:[%s2 + $0x38] sm:$0xff]
  %v169 = vsel %vm86, %v73, 0
  %v172 = vsel %vm86, %v74, 0
  %v175 = vsel %vm86, %v75, 0
  %v178 = vsel %vm86, %v76, 0
  %v181 = vsel %vm86, %v77, 0
  %v184 = vsel %vm86, %v78, 0
  %v187 = vsel %vm86, %v79, 0
  %v190 = vsel %vm86, %v80, 0
  %192 = vmatprep.subr.mxu0 0.0
  %193 = vmatpush1.msra.mxu0 0.0
  %194 = vmatprep.subr.mxu0 0.0
  %195 = vmatpush1.msra.mxu0 0.0
  %196 = vmatprep.subr.mxu0 0.0
  %197 = vmatpush1.msra.mxu0 0.0
  %198 = vmatprep.subr.mxu0 0.0
  %199 = vmatpush1.msra.mxu0 0.0
  %200 = vmatprep.subr.mxu0 0.0
  %201 = vmatpush1.msra.mxu0 0.0
  %202 = vmatprep.subr.mxu0 0.0
  %203 = vmatpush1.msra.mxu0 0.0
  %204 = vmatprep.subr.mxu0 0.0
  %205 = vmatpush1.msra.mxu0 0.0
  %206 = vmatprep.subr.mxu0 0.0
  %207 = vmatpush1.msra.mxu0 0.0
  %208 = vmatprep.subr.mxu0 0.0
  %209 = vmatpush1.msra.mxu0 0.0
  %210 = vmatprep.subr.mxu0 0.0
  %211 = vmatpush1.msra.mxu0 0.0
  %212 = vmatprep.subr.mxu0 0.0
  %213 = vmatpush1.msra.mxu0 0.0
  %214 = vmatprep.subr.mxu0 0.0
  %215 = vmatpush1.msra.mxu0 0.0
  %216 = vmatprep.subr.mxu0 0.0
  %217 = vmatpush1.msra.mxu0 %v72
  %218 = vmatprep.subr.mxu0 0.0
  %219 = vmatpush1.msra.mxu0 %v71
  %220 = vmatprep.subr.mxu0 0.0
  %221 = vmatpush1.msra.mxu0 %v70
  %222 = vmatprep.subr.mxu0 0.0
  %223 = vmatpush1.msra.mxu0 %v69
  %224 = vmatprep.subr.mxu0 0.0
  %225 = vmatpush2.msra.mxu0 0.0
  %226 = vmatprep.subr.mxu0 0.0
  %227 = vmatpush2.msra.mxu0 0.0
  %228 = vmatprep.subr.mxu0 0.0
  %229 = vmatpush2.msra.mxu0 0.0
  %230 = vmatprep.subr.mxu0 0.0
  %231 = vmatpush2.msra.mxu0 0.0
  %232 = vmatprep.subr.mxu0 0.0
  %233 = vmatpush2.msra.mxu0 0.0
  %234 = vmatprep.subr.mxu0 0.0
  %235 = vmatpush2.msra.mxu0 0.0
  %236 = vmatprep.subr.mxu0 0.0
  %237 = vmatpush2.msra.mxu0 0.0
  %238 = vmatprep.subr.mxu0 0.0
  %239 = vmatpush2.msra.mxu0 0.0
  %240 = vmatprep.subr.mxu0 0.0
  %241 = vmatpush2.msra.mxu0 0.0
  %242 = vmatprep.subr.mxu0 0.0
  %243 = vmatpush2.msra.mxu0 0.0
  %244 = vmatprep.subr.mxu0 0.0
  %245 = vmatpush2.msra.mxu0 0.0
  %246 = vmatprep.subr.mxu0 0.0
  %247 = vmatpush2.msra.mxu0 0.0
  %248 = vmatprep.subr.mxu0 0.0
  %249 = vmatpush2.msra.mxu0 0.0
  %250 = vmatprep.subr.mxu0 0.0
  %251 = vmatpush2.msra.mxu0 0.0
  %252 = vmatprep.subr.mxu0 0.0
  %253 = vmatpush2.msra.mxu0 0.0
  %254 = vmatprep.subr.mxu0 0.0
  %255 = vmatpush2.msra.mxu0 0.0
  %256 = vmatprep.mubr.f32.mxu0 0.0
  %257 = vmatmul.mubr.f32.gmra.mxu0 %v169
  %v258 = vpop.f32.mrf.mxu0
  %v259 = vadd.f32 %v160, %v258
  %v260 = vpop.f32.mrf.mxu0
  %261 = vmatprep.mubr.f32.mxu0 0.0
  %262 = vmatmul.mubr.f32.gmra.mxu0 %v172
  %v263 = vpop.f32.mrf.mxu0
  %v264 = vadd.f32 %v161, %v263
  %v265 = vpop.f32.mrf.mxu0
  %266 = vmatprep.mubr.f32.mxu0 0.0
  %267 = vmatmul.mubr.f32.gmra.mxu0 %v175
  %v268 = vpop.f32.mrf.mxu0
  %v269 = vadd.f32 %v162, %v268
  %v270 = vpop.f32.mrf.mxu0
  %271 = vmatprep.mubr.f32.mxu0 0.0
  %272 = vmatmul.mubr.f32.gmra.mxu0 %v178
  %v273 = vpop.f32.mrf.mxu0
  %v274 = vadd.f32 %v163, %v273
  %v275 = vpop.f32.mrf.mxu0
  %276 = vmatprep.mubr.f32.mxu0 0.0
  %277 = vmatmul.mubr.f32.gmra.mxu0 %v181
  %v278 = vpop.f32.mrf.mxu0
  %v279 = vadd.f32 %v164, %v278
  %v280 = vpop.f32.mrf.mxu0
  %281 = vmatprep.mubr.f32.mxu0 0.0
  %282 = vmatmul.mubr.f32.gmra.mxu0 %v184
  %v283 = vpop.f32.mrf.mxu0
  %v284 = vadd.f32 %v165, %v283
  %v285 = vpop.f32.mrf.mxu0
  %286 = vmatprep.mubr.f32.mxu0 0.0
  %287 = vmatmul.mubr.f32.gmra.mxu0 %v187
  %v288 = vpop.f32.mrf.mxu0
  %v289 = vadd.f32 %v166, %v288
  %v290 = vpop.f32.mrf.mxu0
  %291 = vmatprep.mubr.f32.mxu0 0.0
  %292 = vmatmul.mubr.f32.gmra.mxu0 %v190
  %v293 = vpop.f32.mrf.mxu0
  %v294 = vadd.f32 %v167, %v293
  %v295 = vpop.f32.mrf.mxu0
  %296 = vdwg.mxu0
  %v297 = vlaneseq
  %v298 = vshrl.u32 %v297, 7
  %v299 = vadd.s32 %v298, 8
  %v300 = vadd.s32 %v298, 16
  %v301 = vadd.s32 %v298, 24
  %v302 = vadd.s32 %v298, 32
  %v303 = vadd.s32 %v298, 40
  %v304 = vadd.s32 %v298, 48
  %v305 = vadd.s32 %v298, 56
  %v306 = vlaneseq
  %v307 = vand.u32 %v306, 127
  %v308 = vlaneseq
  %v309 = vshrl.u32 %v308, 7
  %v310 = vsub.s32 0, %v309
  %v311 = vrot.slane %v157, %v310
  %313 = vset.pattern.permute.xlu0 0
  %314 = vperm.xlu0 %313, %v259
  %v315 = vpop.permute.xlu0 %314
  %318 = vset.pattern.permute.xlu0 0
  %319 = vperm.xlu0 %318, %v264
  %v320 = vpop.permute.xlu0 %319
  %323 = vset.pattern.permute.xlu0 0
  %324 = vperm.xlu0 %323, %v269
  %v325 = vpop.permute.xlu0 %324
  %328 = vset.pattern.permute.xlu0 0
  %329 = vperm.xlu0 %328, %v274
  %v330 = vpop.permute.xlu0 %329
  %333 = vset.pattern.permute.xlu0 0
  %334 = vperm.xlu0 %333, %v279
  %v335 = vpop.permute.xlu0 %334
  %338 = vset.pattern.permute.xlu0 0
  %339 = vperm.xlu0 %338, %v284
  %v340 = vpop.permute.xlu0 %339
  %343 = vset.pattern.permute.xlu0 0
  %344 = vperm.xlu0 %343, %v289
  %v345 = vpop.permute.xlu0 %344
  %348 = vset.pattern.permute.xlu0 0
  %349 = vperm.xlu0 %348, %v294
  %v350 = vpop.permute.xlu0 %349
  %vm352 = vcmp.gt.f32.partialorder %v311, %v315
  %vm353 = vcmp.gt.f32.partialorder %v311, %v320
  %vm354 = vcmp.gt.f32.partialorder %v311, %v325
  %vm355 = vcmp.gt.f32.partialorder %v311, %v330
  %vm356 = vcmp.gt.f32.partialorder %v311, %v335
  %vm357 = vcmp.gt.f32.partialorder %v311, %v340
  %vm358 = vcmp.gt.f32.partialorder %v311, %v345
  %vm359 = vcmp.gt.f32.partialorder %v311, %v350
  %vm360 = vcmp.eq.f32.partialorder %v311, %v315
  %vm361 = vcmp.eq.f32.partialorder %v311, %v320
  %vm362 = vcmp.eq.f32.partialorder %v311, %v325
  %vm363 = vcmp.eq.f32.partialorder %v311, %v330
  %vm364 = vcmp.eq.f32.partialorder %v311, %v335
  %vm365 = vcmp.eq.f32.partialorder %v311, %v340
  %vm366 = vcmp.eq.f32.partialorder %v311, %v345
  %vm367 = vcmp.eq.f32.partialorder %v311, %v350
  %vm368 = vcmp.ne.s32.totalorder %v298, %v307
  %vm369 = vcmp.ne.s32.totalorder %v299, %v307
  %vm370 = vcmp.ne.s32.totalorder %v300, %v307
  %vm371 = vcmp.ne.s32.totalorder %v301, %v307
  %vm372 = vcmp.ne.s32.totalorder %v302, %v307
  %vm373 = vcmp.ne.s32.totalorder %v303, %v307
  %vm374 = vcmp.ne.s32.totalorder %v304, %v307
  %vm375 = vcmp.ne.s32.totalorder %v305, %v307
  %vm376 = vcmp.lt.s32.totalorder %v307, %v298
  %vm377 = vcmp.lt.s32.totalorder %v307, %v299
  %vm378 = vcmp.lt.s32.totalorder %v307, %v300
  %vm379 = vcmp.lt.s32.totalorder %v307, %v301
  %vm380 = vcmp.lt.s32.totalorder %v307, %v302
  %vm381 = vcmp.lt.s32.totalorder %v307, %v303
  %vm382 = vcmp.lt.s32.totalorder %v307, %v304
  %vm383 = vcmp.lt.s32.totalorder %v307, %v305
  %vm384 = vmand %vm360, %vm376
  %vm385 = vmand %vm361, %vm377
  %vm386 = vmand %vm362, %vm378
  %vm387 = vmand %vm363, %vm379
  %vm388 = vmand %vm364, %vm380
  %vm389 = vmand %vm365, %vm381
  %vm390 = vmand %vm366, %vm382
  %vm391 = vmand %vm367, %vm383
  %vm392 = vmor %vm352, %vm384
  %vm393 = vmor %vm353, %vm385
  %vm394 = vmor %vm354, %vm386
  %vm395 = vmor %vm355, %vm387
  %vm396 = vmor %vm356, %vm388
  %vm397 = vmor %vm357, %vm389
  %vm398 = vmor %vm358, %vm390
  %vm399 = vmor %vm359, %vm391
  %vm400 = vmand %vm368, %vm392
  %vm401 = vmand %vm369, %vm393
  %vm402 = vmand %vm370, %vm394
  %vm403 = vmand %vm371, %vm395
  %vm404 = vmand %vm372, %vm396
  %vm405 = vmand %vm373, %vm397
  %vm406 = vmand %vm374, %vm398
  %vm407 = vmand %vm375, %vm399
  %v408 = vsel %vm400, 1, 0
  %v409 = vsel %vm401, 1, 0
  %v410 = vsel %vm402, 1, 0
  %v411 = vsel %vm403, 1, 0
  %v412 = vsel %vm404, 1, 0
  %v413 = vsel %vm405, 1, 0
  %v414 = vsel %vm406, 1, 0
  %v415 = vsel %vm407, 1, 0
  %vm416 = vcmask 523264
  %v417 = vsel %vm416, %v408, 0
  %v418 = vand.u32 %v417, 65535
  %v419 = vshrl.u32 %v417, 16
  %v420 = vcvt.s32.f32 %v418
  %v421 = vcvt.s32.f32 %v419
  %422 = vadd.xlane.f32.xlu0 %v420
  %v423 = vpop.xlane.xlu0 %422
  %424 = vadd.xlane.f32.xlu0 %v421
  %v425 = vpop.xlane.xlu0 %424
  %v426 = vcvt.f32.s32 %v423
  %v427 = vcvt.f32.s32 %v425
  %v428 = vshll.u32 %v427, 16
  %v429 = vadd.s32 %v428, %v426
  %v430 = vsel %vm416, %v409, 0
  %v431 = vand.u32 %v430, 65535
  %v432 = vshrl.u32 %v430, 16
  %v433 = vcvt.s32.f32 %v431
  %v434 = vcvt.s32.f32 %v432
  %435 = vadd.xlane.f32.xlu0 %v433
  %v436 = vpop.xlane.xlu0 %435
  %437 = vadd.xlane.f32.xlu0 %v434
  %v438 = vpop.xlane.xlu0 %437
  %v439 = vcvt.f32.s32 %v436
  %v440 = vcvt.f32.s32 %v438
  %v441 = vshll.u32 %v440, 16
  %v442 = vadd.s32 %v441, %v439
  %v443 = vsel %vm416, %v410, 0
  %v444 = vand.u32 %v443, 65535
  %v445 = vshrl.u32 %v443, 16
  %v446 = vcvt.s32.f32 %v444
  %v447 = vcvt.s32.f32 %v445
  %448 = vadd.xlane.f32.xlu0 %v446
  %v449 = vpop.xlane.xlu0 %448
  %450 = vadd.xlane.f32.xlu0 %v447
  %v451 = vpop.xlane.xlu0 %450
  %v452 = vcvt.f32.s32 %v449
  %v453 = vcvt.f32.s32 %v451
  %v454 = vshll.u32 %v453, 16
  %v455 = vadd.s32 %v454, %v452
  %v456 = vsel %vm416, %v411, 0
  %v457 = vand.u32 %v456, 65535
  %v458 = vshrl.u32 %v456, 16
  %v459 = vcvt.s32.f32 %v457
  %v460 = vcvt.s32.f32 %v458
  %461 = vadd.xlane.f32.xlu0 %v459
  %v462 = vpop.xlane.xlu0 %461
  %463 = vadd.xlane.f32.xlu0 %v460
  %v464 = vpop.xlane.xlu0 %463
  %v465 = vcvt.f32.s32 %v462
  %v466 = vcvt.f32.s32 %v464
  %v467 = vshll.u32 %v466, 16
  %v468 = vadd.s32 %v467, %v465
  %v469 = vsel %vm416, %v412, 0
  %v470 = vand.u32 %v469, 65535
  %v471 = vshrl.u32 %v469, 16
  %v472 = vcvt.s32.f32 %v470
  %v473 = vcvt.s32.f32 %v471
  %474 = vadd.xlane.f32.xlu0 %v472
  %v475 = vpop.xlane.xlu0 %474
  %476 = vadd.xlane.f32.xlu0 %v473
  %v477 = vpop.xlane.xlu0 %476
  %v478 = vcvt.f32.s32 %v475
  %v479 = vcvt.f32.s32 %v477
  %v480 = vshll.u32 %v479, 16
  %v481 = vadd.s32 %v480, %v478
  %v482 = vsel %vm416, %v413, 0
  %v483 = vand.u32 %v482, 65535
  %v484 = vshrl.u32 %v482, 16
  %v485 = vcvt.s32.f32 %v483
  %v486 = vcvt.s32.f32 %v484
  %487 = vadd.xlane.f32.xlu0 %v485
  %v488 = vpop.xlane.xlu0 %487
  %489 = vadd.xlane.f32.xlu0 %v486
  %v490 = vpop.xlane.xlu0 %489
  %v491 = vcvt.f32.s32 %v488
  %v492 = vcvt.f32.s32 %v490
  %v493 = vshll.u32 %v492, 16
  %v494 = vadd.s32 %v493, %v491
  %v495 = vsel %vm416, %v414, 0
  %v496 = vand.u32 %v495, 65535
  %v497 = vshrl.u32 %v495, 16
  %v498 = vcvt.s32.f32 %v496
  %v499 = vcvt.s32.f32 %v497
  %500 = vadd.xlane.f32.xlu0 %v498
  %v501 = vpop.xlane.xlu0 %500
  %502 = vadd.xlane.f32.xlu0 %v499
  %v503 = vpop.xlane.xlu0 %502
  %v504 = vcvt.f32.s32 %v501
  %v505 = vcvt.f32.s32 %v503
  %v506 = vshll.u32 %v505, 16
  %v507 = vadd.s32 %v506, %v504
  %v508 = vsel %vm416, %v415, 0
  %v509 = vand.u32 %v508, 65535
  %v510 = vshrl.u32 %v508, 16
  %v511 = vcvt.s32.f32 %v509
  %v512 = vcvt.s32.f32 %v510
  %513 = vadd.xlane.f32.xlu0 %v511
  %v514 = vpop.xlane.xlu0 %513
  %515 = vadd.xlane.f32.xlu0 %v512
  %v516 = vpop.xlane.xlu0 %515
  %v517 = vcvt.f32.s32 %v514
  %v518 = vcvt.f32.s32 %v516
  %v519 = vshll.u32 %v518, 16
  %v520 = vadd.s32 %v519, %v517
  %vm521 = vcmp.eq.s32.totalorder %v429, %v307
  %vm522 = vcmp.eq.s32.totalorder %v442, %v307
  %vm523 = vcmp.eq.s32.totalorder %v455, %v307
  %vm524 = vcmp.eq.s32.totalorder %v468, %v307
  %vm525 = vcmp.eq.s32.totalorder %v481, %v307
  %vm526 = vcmp.eq.s32.totalorder %v494, %v307
  %vm527 = vcmp.eq.s32.totalorder %v507, %v307
  %vm528 = vcmp.eq.s32.totalorder %v520, %v307
  %v529 = vtanh.pop %v259
  %v530 = vtanh.pop %v264
  %v531 = vtanh.pop %v269
  %v532 = vtanh.pop %v274
  %v533 = vtanh.pop %v279
  %v534 = vtanh.pop %v284
  %v535 = vtanh.pop %v289
  %v536 = vtanh.pop %v294
  %538 = vset.pattern.permute.xlu0 0
  %539 = vperm.xlu0 %538, %v529
  %v540 = vpop.permute.xlu0 %539
  %543 = vset.pattern.permute.xlu0 0
  %544 = vperm.xlu0 %543, %v530
  %v545 = vpop.permute.xlu0 %544
  %548 = vset.pattern.permute.xlu0 0
  %549 = vperm.xlu0 %548, %v531
  %v550 = vpop.permute.xlu0 %549
  %553 = vset.pattern.permute.xlu0 0
  %554 = vperm.xlu0 %553, %v532
  %v555 = vpop.permute.xlu0 %554
  %558 = vset.pattern.permute.xlu0 0
  %559 = vperm.xlu0 %558, %v533
  %v560 = vpop.permute.xlu0 %559
  %563 = vset.pattern.permute.xlu0 0
  %564 = vperm.xlu0 %563, %v534
  %v565 = vpop.permute.xlu0 %564
  %568 = vset.pattern.permute.xlu0 0
  %569 = vperm.xlu0 %568, %v535
  %v570 = vpop.permute.xlu0 %569
  %573 = vset.pattern.permute.xlu0 0
  %574 = vperm.xlu0 %573, %v536
  %v575 = vpop.permute.xlu0 %574
  %v577 = vsel %vm521, %v540, 0.0
  %v578 = vsel %vm522, %v545, 0.0
  %v579 = vsel %vm523, %v550, 0.0
  %v580 = vsel %vm524, %v555, 0.0
  %v581 = vsel %vm525, %v560, 0.0
  %v582 = vsel %vm526, %v565, 0.0
  %v583 = vsel %vm527, %v570, 0.0
  %v584 = vsel %vm528, %v575, 0.0
  %v586 = vsel %vm416, %v81, 0
  %v589 = vsel %vm416, %v82, 0
  %v592 = vsel %vm416, %v83, 0
  %v595 = vsel %vm416, %v84, 0
  %597 = vmatprep.subr.mxu0 0.0
  %598 = vmatpush1.msra.mxu0 0.0
  %599 = vmatprep.subr.mxu0 0.0
  %600 = vmatpush1.msra.mxu0 0.0
  %601 = vmatprep.subr.mxu0 0.0
  %602 = vmatpush1.msra.mxu0 0.0
  %603 = vmatprep.subr.mxu0 0.0
  %604 = vmatpush1.msra.mxu0 0.0
  %605 = vmatprep.subr.mxu0 0.0
  %606 = vmatpush1.msra.mxu0 0.0
  %607 = vmatprep.subr.mxu0 0.0
  %608 = vmatpush1.msra.mxu0 0.0
  %609 = vmatprep.subr.mxu0 0.0
  %610 = vmatpush1.msra.mxu0 0.0
  %611 = vmatprep.subr.mxu0 0.0
  %612 = vmatpush1.msra.mxu0 0.0
  %613 = vmatprep.subr.mxu0 0.0
  %614 = vmatpush1.msra.mxu0 %v584
  %615 = vmatprep.subr.mxu0 0.0
  %616 = vmatpush1.msra.mxu0 %v583
  %617 = vmatprep.subr.mxu0 0.0
  %618 = vmatpush1.msra.mxu0 %v582
  %619 = vmatprep.subr.mxu0 0.0
  %620 = vmatpush1.msra.mxu0 %v581
  %621 = vmatprep.subr.mxu0 0.0
  %622 = vmatpush1.msra.mxu0 %v580
  %623 = vmatprep.subr.mxu0 0.0
  %624 = vmatpush1.msra.mxu0 %v579
  %625 = vmatprep.subr.mxu0 0.0
  %626 = vmatpush1.msra.mxu0 %v578
  %627 = vmatprep.subr.mxu0 0.0
  %628 = vmatpush1.msra.mxu0 %v577
  %629 = vmatprep.subr.mxu0 0.0
  %630 = vmatpush2.msra.mxu0 0.0
  %631 = vmatprep.subr.mxu0 0.0
  %632 = vmatpush2.msra.mxu0 0.0
  %633 = vmatprep.subr.mxu0 0.0
  %634 = vmatpush2.msra.mxu0 0.0
  %635 = vmatprep.subr.mxu0 0.0
  %636 = vmatpush2.msra.mxu0 0.0
  %637 = vmatprep.subr.mxu0 0.0
  %638 = vmatpush2.msra.mxu0 0.0
  %639 = vmatprep.subr.mxu0 0.0
  %640 = vmatpush2.msra.mxu0 0.0
  %641 = vmatprep.subr.mxu0 0.0
  %642 = vmatpush2.msra.mxu0 0.0
  %643 = vmatprep.subr.mxu0 0.0
  %644 = vmatpush2.msra.mxu0 0.0
  %645 = vmatprep.subr.mxu0 0.0
  %646 = vmatpush2.msra.mxu0 0.0
  %647 = vmatprep.subr.mxu0 0.0
  %648 = vmatpush2.msra.mxu0 0.0
  %649 = vmatprep.subr.mxu0 0.0
  %650 = vmatpush2.msra.mxu0 0.0
  %651 = vmatprep.subr.mxu0 0.0
  %652 = vmatpush2.msra.mxu0 0.0
  %653 = vmatprep.subr.mxu0 0.0
  %654 = vmatpush2.msra.mxu0 0.0
  %655 = vmatprep.subr.mxu0 0.0
  %656 = vmatpush2.msra.mxu0 0.0
  %657 = vmatprep.subr.mxu0 0.0
  %658 = vmatpush2.msra.mxu0 0.0
  %659 = vmatprep.subr.mxu0 0.0
  %660 = vmatpush2.msra.mxu0 0.0
  %661 = vmatprep.mubr.f32.mxu0 0.0
  %662 = vmatmul.mubr.f32.gmra.mxu0 %v586
  %v663 = vpop.f32.mrf.mxu0
  %v664 = vadd.f32 0.0, %v663
  %v665 = vpop.f32.mrf.mxu0
  %666 = vmatprep.mubr.f32.mxu0 0.0
  %667 = vmatmul.mubr.f32.gmra.mxu0 %v589
  %v668 = vpop.f32.mrf.mxu0
  %v669 = vadd.f32 0.0, %v668
  %v670 = vpop.f32.mrf.mxu0
  %671 = vmatprep.mubr.f32.mxu0 0.0
  %672 = vmatmul.mubr.f32.gmra.mxu0 %v592
  %v673 = vpop.f32.mrf.mxu0
  %v674 = vadd.f32 0.0, %v673
  %v675 = vpop.f32.mrf.mxu0
  %676 = vmatprep.mubr.f32.mxu0 0.0
  %677 = vmatmul.mubr.f32.gmra.mxu0 %v595
  %v678 = vpop.f32.mrf.mxu0
  %v679 = vadd.f32 0.0, %v678
  %v680 = vpop.f32.mrf.mxu0
  %681 = vdwg.mxu0
  %v682 = vld [vmem:[%s4] sm:$0xff]
  %v683 = vld [vmem:[%s4 + $0x8] sm:$0xff]
  %v684 = vld [vmem:[%s4 + $0x10] sm:$0xff]
  %v685 = vld [vmem:[%s4 + $0x18] sm:$0xff]
  %v686 = vld [vmem:[%s10] sm:$0xff]
  %v687 = vld [vmem:[%s10 + $0x8] sm:$0xff]
  %v688 = vld [vmem:[%s10 + $0x10] sm:$0xff]
  %v689 = vld [vmem:[%s10 + $0x18] sm:$0xff]
  %v690 = vld [vmem:[%s10 + $0x20] sm:$0xff]
  %v691 = vld [vmem:[%s10 + $0x28] sm:$0xff]
  %v692 = vld [vmem:[%s10 + $0x30] sm:$0xff]
  %v693 = vld [vmem:[%s10 + $0x38] sm:$0xff]
  %v694 = vld [vmem:[%s10 + $0x40] sm:$0xff]
  %v695 = vld [vmem:[%s10 + $0x48] sm:$0xff]
  %v696 = vld [vmem:[%s10 + $0x50] sm:$0xff]
  %v697 = vld [vmem:[%s10 + $0x58] sm:$0xff]
  %v698 = vld [vmem:[%s7] sm:$0xff]
  %v699 = vld [vmem:[%s7 + $0x8] sm:$0xff]
  %v700 = vld [vmem:[%s7 + $0x10] sm:$0xff]
  %v701 = vld [vmem:[%s7 + $0x18] sm:$0xff]
  %v702 = vld [vmem:[%s7 + $0x20] sm:$0xff]
  %v703 = vld [vmem:[%s7 + $0x28] sm:$0xff]
  %v704 = vld [vmem:[%s7 + $0x30] sm:$0xff]
  %v705 = vld [vmem:[%s7 + $0x38] sm:$0xff]
  %v706 = vld [vmem:[%s7 + $0x40] sm:$0xff]
  %v707 = vld [vmem:[%s7 + $0x48] sm:$0xff]
  %v708 = vld [vmem:[%s7 + $0x50] sm:$0xff]
  %v709 = vld [vmem:[%s7 + $0x58] sm:$0xff]
  %v711 = vsel %vm86, %v698, 0
  %v714 = vsel %vm86, %v699, 0
  %v717 = vsel %vm86, %v700, 0
  %v720 = vsel %vm86, %v701, 0
  %v723 = vsel %vm86, %v702, 0
  %v726 = vsel %vm86, %v703, 0
  %v729 = vsel %vm86, %v704, 0
  %v732 = vsel %vm86, %v705, 0
  %v735 = vsel %vm86, %v706, 0
  %v738 = vsel %vm86, %v707, 0
  %v741 = vsel %vm86, %v708, 0
  %v744 = vsel %vm86, %v709, 0
  %746 = vmatprep.subr.mxu0 0.0
  %747 = vmatpush1.msra.mxu0 0.0
  %748 = vmatprep.subr.mxu0 0.0
  %749 = vmatpush1.msra.mxu0 0.0
  %750 = vmatprep.subr.mxu0 0.0
  %751 = vmatpush1.msra.mxu0 0.0
  %752 = vmatprep.subr.mxu0 0.0
  %753 = vmatpush1.msra.mxu0 0.0
  %754 = vmatprep.subr.mxu0 0.0
  %755 = vmatpush1.msra.mxu0 0.0
  %756 = vmatprep.subr.mxu0 0.0
  %757 = vmatpush1.msra.mxu0 0.0
  %758 = vmatprep.subr.mxu0 0.0
  %759 = vmatpush1.msra.mxu0 0.0
  %760 = vmatprep.subr.mxu0 0.0
  %761 = vmatpush1.msra.mxu0 0.0
  %762 = vmatprep.subr.mxu0 0.0
  %763 = vmatpush1.msra.mxu0 0.0
  %764 = vmatprep.subr.mxu0 0.0
  %765 = vmatpush1.msra.mxu0 0.0
  %766 = vmatprep.subr.mxu0 0.0
  %767 = vmatpush1.msra.mxu0 0.0
  %768 = vmatprep.subr.mxu0 0.0
  %769 = vmatpush1.msra.mxu0 0.0
  %770 = vmatprep.subr.mxu0 0.0
  %771 = vmatpush1.msra.mxu0 %v679
  %772 = vmatprep.subr.mxu0 0.0
  %773 = vmatpush1.msra.mxu0 %v674
  %774 = vmatprep.subr.mxu0 0.0
  %775 = vmatpush1.msra.mxu0 %v669
  %776 = vmatprep.subr.mxu0 0.0
  %777 = vmatpush1.msra.mxu0 %v664
  %778 = vmatprep.subr.mxu0 0.0
  %779 = vmatpush2.msra.mxu0 0.0
  %780 = vmatprep.subr.mxu0 0.0
  %781 = vmatpush2.msra.mxu0 0.0
  %782 = vmatprep.subr.mxu0 0.0
  %783 = vmatpush2.msra.mxu0 0.0
  %784 = vmatprep.subr.mxu0 0.0
  %785 = vmatpush2.msra.mxu0 0.0
  %786 = vmatprep.subr.mxu0 0.0
  %787 = vmatpush2.msra.mxu0 0.0
  %788 = vmatprep.subr.mxu0 0.0
  %789 = vmatpush2.msra.mxu0 0.0
  %790 = vmatprep.subr.mxu0 0.0
  %791 = vmatpush2.msra.mxu0 0.0
  %792 = vmatprep.subr.mxu0 0.0
  %793 = vmatpush2.msra.mxu0 0.0
  %794 = vmatprep.subr.mxu0 0.0
  %795 = vmatpush2.msra.mxu0 0.0
  %796 = vmatprep.subr.mxu0 0.0
  %797 = vmatpush2.msra.mxu0 0.0
  %798 = vmatprep.subr.mxu0 0.0
  %799 = vmatpush2.msra.mxu0 0.0
  %800 = vmatprep.subr.mxu0 0.0
  %801 = vmatpush2.msra.mxu0 0.0
  %802 = vmatprep.subr.mxu0 0.0
  %803 = vmatpush2.msra.mxu0 0.0
  %804 = vmatprep.subr.mxu0 0.0
  %805 = vmatpush2.msra.mxu0 0.0
  %806 = vmatprep.subr.mxu0 0.0
  %807 = vmatpush2.msra.mxu0 0.0
  %808 = vmatprep.subr.mxu0 0.0
  %809 = vmatpush2.msra.mxu0 0.0
  %810 = vmatprep.mubr.f32.mxu0 0.0
  %811 = vmatmul.mubr.f32.gmra.mxu0 %v711
  %v812 = vpop.f32.mrf.mxu0
  %v813 = vadd.f32 0.0, %v812
  %v814 = vpop.f32.mrf.mxu0
  %815 = vmatprep.mubr.f32.mxu0 0.0
  %816 = vmatmul.mubr.f32.gmra.mxu0 %v714
  %v817 = vpop.f32.mrf.mxu0
  %v818 = vadd.f32 0.0, %v817
  %v819 = vpop.f32.mrf.mxu0
  %820 = vmatprep.mubr.f32.mxu0 0.0
  %821 = vmatmul.mubr.f32.gmra.mxu0 %v717
  %v822 = vpop.f32.mrf.mxu0
  %v823 = vadd.f32 0.0, %v822
  %v824 = vpop.f32.mrf.mxu0
  %825 = vmatprep.mubr.f32.mxu0 0.0
  %826 = vmatmul.mubr.f32.gmra.mxu0 %v720
  %v827 = vpop.f32.mrf.mxu0
  %v828 = vadd.f32 0.0, %v827
  %v829 = vpop.f32.mrf.mxu0
  %830 = vmatprep.mubr.f32.mxu0 0.0
  %831 = vmatmul.mubr.f32.gmra.mxu0 %v723
  %v832 = vpop.f32.mrf.mxu0
  %v833 = vadd.f32 0.0, %v832
  %v834 = vpop.f32.mrf.mxu0
  %835 = vmatprep.mubr.f32.mxu0 0.0
  %836 = vmatmul.mubr.f32.gmra.mxu0 %v726
  %v837 = vpop.f32.mrf.mxu0
  %v838 = vadd.f32 0.0, %v837
  %v839 = vpop.f32.mrf.mxu0
  %840 = vmatprep.mubr.f32.mxu0 0.0
  %841 = vmatmul.mubr.f32.gmra.mxu0 %v729
  %v842 = vpop.f32.mrf.mxu0
  %v843 = vadd.f32 0.0, %v842
  %v844 = vpop.f32.mrf.mxu0
  %845 = vmatprep.mubr.f32.mxu0 0.0
  %846 = vmatmul.mubr.f32.gmra.mxu0 %v732
  %v847 = vpop.f32.mrf.mxu0
  %v848 = vadd.f32 0.0, %v847
  %v849 = vpop.f32.mrf.mxu0
  %850 = vmatprep.mubr.f32.mxu0 0.0
  %851 = vmatmul.mubr.f32.gmra.mxu0 %v735
  %v852 = vpop.f32.mrf.mxu0
  %v853 = vadd.f32 0.0, %v852
  %v854 = vpop.f32.mrf.mxu0
  %855 = vmatprep.mubr.f32.mxu0 0.0
  %856 = vmatmul.mubr.f32.gmra.mxu0 %v738
  %v857 = vpop.f32.mrf.mxu0
  %v858 = vadd.f32 0.0, %v857
  %v859 = vpop.f32.mrf.mxu0
  %860 = vmatprep.mubr.f32.mxu0 0.0
  %861 = vmatmul.mubr.f32.gmra.mxu0 %v741
  %v862 = vpop.f32.mrf.mxu0
  %v863 = vadd.f32 0.0, %v862
  %v864 = vpop.f32.mrf.mxu0
  %865 = vmatprep.mubr.f32.mxu0 0.0
  %866 = vmatmul.mubr.f32.gmra.mxu0 %v744
  %v867 = vpop.f32.mrf.mxu0
  %v868 = vadd.f32 0.0, %v867
  %v869 = vpop.f32.mrf.mxu0
  %870 = vdwg.mxu0
  %v871 = vld [vmem:[%s8] sm:$0xff]
  %v872 = vld [vmem:[%s8 + $0x8] sm:$0xff]
  %v873 = vld [vmem:[%s8 + $0x10] sm:$0xff]
  %v874 = vld [vmem:[%s8 + $0x18] sm:$0xff]
  %v875 = vld [vmem:[%s8 + $0x20] sm:$0xff]
  %v876 = vld [vmem:[%s8 + $0x28] sm:$0xff]
  %v877 = vld [vmem:[%s8 + $0x30] sm:$0xff]
  %v878 = vld [vmem:[%s8 + $0x38] sm:$0xff]
  %v880 = vsel %vm86, %v871, 0
  %v883 = vsel %vm86, %v872, 0
  %v886 = vsel %vm86, %v873, 0
  %v889 = vsel %vm86, %v874, 0
  %v892 = vsel %vm86, %v875, 0
  %v895 = vsel %vm86, %v876, 0
  %v898 = vsel %vm86, %v877, 0
  %v901 = vsel %vm86, %v878, 0
  %903 = vmatprep.subr.mxu0 0.0
  %904 = vmatpush1.msra.mxu0 0.0
  %905 = vmatprep.subr.mxu0 0.0
  %906 = vmatpush1.msra.mxu0 0.0
  %907 = vmatprep.subr.mxu0 0.0
  %908 = vmatpush1.msra.mxu0 0.0
  %909 = vmatprep.subr.mxu0 0.0
  %910 = vmatpush1.msra.mxu0 0.0
  %911 = vmatprep.subr.mxu0 0.0
  %912 = vmatpush1.msra.mxu0 0.0
  %913 = vmatprep.subr.mxu0 0.0
  %914 = vmatpush1.msra.mxu0 0.0
  %915 = vmatprep.subr.mxu0 0.0
  %916 = vmatpush1.msra.mxu0 0.0
  %917 = vmatprep.subr.mxu0 0.0
  %918 = vmatpush1.msra.mxu0 0.0
  %919 = vmatprep.subr.mxu0 0.0
  %920 = vmatpush1.msra.mxu0 0.0
  %921 = vmatprep.subr.mxu0 0.0
  %922 = vmatpush1.msra.mxu0 0.0
  %923 = vmatprep.subr.mxu0 0.0
  %924 = vmatpush1.msra.mxu0 0.0
  %925 = vmatprep.subr.mxu0 0.0
  %926 = vmatpush1.msra.mxu0 0.0
  %927 = vmatprep.subr.mxu0 0.0
  %928 = vmatpush1.msra.mxu0 %v685
  %929 = vmatprep.subr.mxu0 0.0
  %930 = vmatpush1.msra.mxu0 %v684
  %931 = vmatprep.subr.mxu0 0.0
  %932 = vmatpush1.msra.mxu0 %v683
  %933 = vmatprep.subr.mxu0 0.0
  %934 = vmatpush1.msra.mxu0 %v682
  %935 = vmatprep.subr.mxu0 0.0
  %936 = vmatpush2.msra.mxu0 0.0
  %937 = vmatprep.subr.mxu0 0.0
  %938 = vmatpush2.msra.mxu0 0.0
  %939 = vmatprep.subr.mxu0 0.0
  %940 = vmatpush2.msra.mxu0 0.0
  %941 = vmatprep.subr.mxu0 0.0
  %942 = vmatpush2.msra.mxu0 0.0
  %943 = vmatprep.subr.mxu0 0.0
  %944 = vmatpush2.msra.mxu0 0.0
  %945 = vmatprep.subr.mxu0 0.0
  %946 = vmatpush2.msra.mxu0 0.0
  %947 = vmatprep.subr.mxu0 0.0
  %948 = vmatpush2.msra.mxu0 0.0
  %949 = vmatprep.subr.mxu0 0.0
  %950 = vmatpush2.msra.mxu0 0.0
  %951 = vmatprep.subr.mxu0 0.0
  %952 = vmatpush2.msra.mxu0 0.0
  %953 = vmatprep.subr.mxu0 0.0
  %954 = vmatpush2.msra.mxu0 0.0
  %955 = vmatprep.subr.mxu0 0.0
  %956 = vmatpush2.msra.mxu0 0.0
  %957 = vmatprep.subr.mxu0 0.0
  %958 = vmatpush2.msra.mxu0 0.0
  %959 = vmatprep.subr.mxu0 0.0
  %960 = vmatpush2.msra.mxu0 0.0
  %961 = vmatprep.subr.mxu0 0.0
  %962 = vmatpush2.msra.mxu0 0.0
  %963 = vmatprep.subr.mxu0 0.0
  %964 = vmatpush2.msra.mxu0 0.0
  %965 = vmatprep.subr.mxu0 0.0
  %966 = vmatpush2.msra.mxu0 0.0
  %967 = vmatprep.mubr.f32.mxu0 0.0
  %968 = vmatmul.mubr.f32.gmra.mxu0 %v880
  %v969 = vpop.f32.mrf.mxu0
  %v970 = vadd.f32 0.0, %v969
  %v971 = vpop.f32.mrf.mxu0
  %972 = vmatprep.mubr.f32.mxu0 0.0
  %973 = vmatmul.mubr.f32.gmra.mxu0 %v883
  %v974 = vpop.f32.mrf.mxu0
  %v975 = vadd.f32 0.0, %v974
  %v976 = vpop.f32.mrf.mxu0
  %977 = vmatprep.mubr.f32.mxu0 0.0
  %978 = vmatmul.mubr.f32.gmra.mxu0 %v886
  %v979 = vpop.f32.mrf.mxu0
  %v980 = vadd.f32 0.0, %v979
  %v981 = vpop.f32.mrf.mxu0
  %982 = vmatprep.mubr.f32.mxu0 0.0
  %983 = vmatmul.mubr.f32.gmra.mxu0 %v889
  %v984 = vpop.f32.mrf.mxu0
  %v985 = vadd.f32 0.0, %v984
  %v986 = vpop.f32.mrf.mxu0
  %987 = vmatprep.mubr.f32.mxu0 0.0
  %988 = vmatmul.mubr.f32.gmra.mxu0 %v892
  %v989 = vpop.f32.mrf.mxu0
  %v990 = vadd.f32 0.0, %v989
  %v991 = vpop.f32.mrf.mxu0
  %992 = vmatprep.mubr.f32.mxu0 0.0
  %993 = vmatmul.mubr.f32.gmra.mxu0 %v895
  %v994 = vpop.f32.mrf.mxu0
  %v995 = vadd.f32 0.0, %v994
  %v996 = vpop.f32.mrf.mxu0
  %997 = vmatprep.mubr.f32.mxu0 0.0
  %998 = vmatmul.mubr.f32.gmra.mxu0 %v898
  %v999 = vpop.f32.mrf.mxu0
  %v1000 = vadd.f32 0.0, %v999
  %v1001 = vpop.f32.mrf.mxu0
  %1002 = vmatprep.mubr.f32.mxu0 0.0
  %1003 = vmatmul.mubr.f32.gmra.mxu0 %v901
  %v1004 = vpop.f32.mrf.mxu0
  %v1005 = vadd.f32 0.0, %v1004
  %v1006 = vpop.f32.mrf.mxu0
  %1007 = vdwg.mxu0
  %v1008 = vadd.f32 %v813, %v970
  %v1009 = vadd.f32 %v818, %v975
  %v1010 = vadd.f32 %v823, %v980
  %v1011 = vadd.f32 %v828, %v985
  %v1012 = vadd.f32 %v833, %v990
  %v1013 = vadd.f32 %v838, %v995
  %v1014 = vadd.f32 %v843, %v1000
  %v1015 = vadd.f32 %v848, %v1005
  %v1016 = vadd.f32 %v1008, %v686
  %v1017 = vadd.f32 %v1009, %v687
  %v1018 = vadd.f32 %v1010, %v688
  %v1019 = vadd.f32 %v1011, %v689
  %v1020 = vadd.f32 %v1012, %v690
  %v1021 = vadd.f32 %v1013, %v691
  %v1022 = vadd.f32 %v1014, %v692
  %v1023 = vadd.f32 %v1015, %v693
  %v1024 = vxor.u32 %v1016, 2147483648
  %v1025 = vxor.u32 %v1017, 2147483648
  %v1026 = vxor.u32 %v1018, 2147483648
  %v1027 = vxor.u32 %v1019, 2147483648
  %v1028 = vxor.u32 %v1020, 2147483648
  %v1029 = vxor.u32 %v1021, 2147483648
  %v1030 = vxor.u32 %v1022, 2147483648
  %v1031 = vxor.u32 %v1023, 2147483648
  %v1032 = vmul.f32 %v1024, 1.442695
  %v1033 = vpow.pop %v1032
  %v1034 = vmul.f32 %v1025, 1.442695
  %v1035 = vpow.pop %v1034
  %v1036 = vmul.f32 %v1026, 1.442695
  %v1037 = vpow.pop %v1036
  %v1038 = vmul.f32 %v1027, 1.442695
  %v1039 = vpow.pop %v1038
  %v1040 = vmul.f32 %v1028, 1.442695
  %v1041 = vpow.pop %v1040
  %v1042 = vmul.f32 %v1029, 1.442695
  %v1043 = vpow.pop %v1042
  %v1044 = vmul.f32 %v1030, 1.442695
  %v1045 = vpow.pop %v1044
  %v1046 = vmul.f32 %v1031, 1.442695
  %v1047 = vpow.pop %v1046
  %v1048 = vadd.f32 %v1033, 1.0
  %v1049 = vadd.f32 %v1035, 1.0
  %v1050 = vadd.f32 %v1037, 1.0
  %v1051 = vadd.f32 %v1039, 1.0
  %v1052 = vadd.f32 %v1041, 1.0
  %v1053 = vadd.f32 %v1043, 1.0
  %v1054 = vadd.f32 %v1045, 1.0
  %v1055 = vadd.f32 %v1047, 1.0
  %v1056 = vrcp.pop %v1048
  %v1057 = vmul.f32 1.0, %v1056
  %v1058 = vrcp.pop %v1049
  %v1059 = vmul.f32 1.0, %v1058
  %v1060 = vrcp.pop %v1050
  %v1061 = vmul.f32 1.0, %v1060
  %v1062 = vrcp.pop %v1051
  %v1063 = vmul.f32 1.0, %v1062
  %v1064 = vrcp.pop %v1052
  %v1065 = vmul.f32 1.0, %v1064
  %v1066 = vrcp.pop %v1053
  %v1067 = vmul.f32 1.0, %v1066
  %v1068 = vrcp.pop %v1054
  %v1069 = vmul.f32 1.0, %v1068
  %v1070 = vrcp.pop %v1055
  %v1071 = vmul.f32 1.0, %v1070
  %v1072 = vld [vmem:[%s9] sm:$0xff]
  %v1073 = vld [vmem:[%s9 + $0x8] sm:$0xff]
  %v1074 = vld [vmem:[%s9 + $0x10] sm:$0xff]
  %v1075 = vld [vmem:[%s9 + $0x18] sm:$0xff]
  %v1076 = vmul.f32 %v1065, %v682
  %v1077 = vmul.f32 %v1067, %v683
  %v1078 = vmul.f32 %v1069, %v684
  %v1079 = vmul.f32 %v1071, %v685
  %v1081 = vsel %vm86, %v1072, 0
  %v1084 = vsel %vm86, %v1073, 0
  %v1087 = vsel %vm86, %v1074, 0
  %v1090 = vsel %vm86, %v1075, 0
  %1092 = vmatprep.subr.mxu0 0.0
  %1093 = vmatpush1.msra.mxu0 0.0
  %1094 = vmatprep.subr.mxu0 0.0
  %1095 = vmatpush1.msra.mxu0 0.0
  %1096 = vmatprep.subr.mxu0 0.0
  %1097 = vmatpush1.msra.mxu0 0.0
  %1098 = vmatprep.subr.mxu0 0.0
  %1099 = vmatpush1.msra.mxu0 0.0
  %1100 = vmatprep.subr.mxu0 0.0
  %1101 = vmatpush1.msra.mxu0 0.0
  %1102 = vmatprep.subr.mxu0 0.0
  %1103 = vmatpush1.msra.mxu0 0.0
  %1104 = vmatprep.subr.mxu0 0.0
  %1105 = vmatpush1.msra.mxu0 0.0
  %1106 = vmatprep.subr.mxu0 0.0
  %1107 = vmatpush1.msra.mxu0 0.0
  %1108 = vmatprep.subr.mxu0 0.0
  %1109 = vmatpush1.msra.mxu0 0.0
  %1110 = vmatprep.subr.mxu0 0.0
  %1111 = vmatpush1.msra.mxu0 0.0
  %1112 = vmatprep.subr.mxu0 0.0
  %1113 = vmatpush1.msra.mxu0 0.0
  %1114 = vmatprep.subr.mxu0 0.0
  %1115 = vmatpush1.msra.mxu0 0.0
  %1116 = vmatprep.subr.mxu0 0.0
  %1117 = vmatpush1.msra.mxu0 %v1079
  %1118 = vmatprep.subr.mxu0 0.0
  %1119 = vmatpush1.msra.mxu0 %v1078
  %1120 = vmatprep.subr.mxu0 0.0
  %1121 = vmatpush1.msra.mxu0 %v1077
  %1122 = vmatprep.subr.mxu0 0.0
  %1123 = vmatpush1.msra.mxu0 %v1076
  %1124 = vmatprep.subr.mxu0 0.0
  %1125 = vmatpush2.msra.mxu0 0.0
  %1126 = vmatprep.subr.mxu0 0.0
  %1127 = vmatpush2.msra.mxu0 0.0
  %1128 = vmatprep.subr.mxu0 0.0
  %1129 = vmatpush2.msra.mxu0 0.0
  %1130 = vmatprep.subr.mxu0 0.0
  %1131 = vmatpush2.msra.mxu0 0.0
  %1132 = vmatprep.subr.mxu0 0.0
  %1133 = vmatpush2.msra.mxu0 0.0
  %1134 = vmatprep.subr.mxu0 0.0
  %1135 = vmatpush2.msra.mxu0 0.0
  %1136 = vmatprep.subr.mxu0 0.0
  %1137 = vmatpush2.msra.mxu0 0.0
  %1138 = vmatprep.subr.mxu0 0.0
  %1139 = vmatpush2.msra.mxu0 0.0
  %1140 = vmatprep.subr.mxu0 0.0
  %1141 = vmatpush2.msra.mxu0 0.0
  %1142 = vmatprep.subr.mxu0 0.0
  %1143 = vmatpush2.msra.mxu0 0.0
  %1144 = vmatprep.subr.mxu0 0.0
  %1145 = vmatpush2.msra.mxu0 0.0
  %1146 = vmatprep.subr.mxu0 0.0
  %1147 = vmatpush2.msra.mxu0 0.0
  %1148 = vmatprep.subr.mxu0 0.0
  %1149 = vmatpush2.msra.mxu0 0.0
  %1150 = vmatprep.subr.mxu0 0.0
  %1151 = vmatpush2.msra.mxu0 0.0
  %1152 = vmatprep.subr.mxu0 0.0
  %1153 = vmatpush2.msra.mxu0 0.0
  %1154 = vmatprep.subr.mxu0 0.0
  %1155 = vmatpush2.msra.mxu0 0.0
  %1156 = vmatprep.mubr.f32.mxu0 0.0
  %1157 = vmatmul.mubr.f32.gmra.mxu0 %v1081
  %v1158 = vpop.f32.mrf.mxu0
  %v1159 = vadd.f32 0.0, %v1158
  %v1160 = vpop.f32.mrf.mxu0
  %1161 = vmatprep.mubr.f32.mxu0 0.0
  %1162 = vmatmul.mubr.f32.gmra.mxu0 %v1084
  %v1163 = vpop.f32.mrf.mxu0
  %v1164 = vadd.f32 0.0, %v1163
  %v1165 = vpop.f32.mrf.mxu0
  %1166 = vmatprep.mubr.f32.mxu0 0.0
  %1167 = vmatmul.mubr.f32.gmra.mxu0 %v1087
  %v1168 = vpop.f32.mrf.mxu0
  %v1169 = vadd.f32 0.0, %v1168
  %v1170 = vpop.f32.mrf.mxu0
  %1171 = vmatprep.mubr.f32.mxu0 0.0
  %1172 = vmatmul.mubr.f32.gmra.mxu0 %v1090
  %v1173 = vpop.f32.mrf.mxu0
  %v1174 = vadd.f32 0.0, %v1173
  %v1175 = vpop.f32.mrf.mxu0
  %1176 = vdwg.mxu0
  %v1177 = vadd.f32 %v853, %v1159
  %v1178 = vadd.f32 %v858, %v1164
  %v1179 = vadd.f32 %v863, %v1169
  %v1180 = vadd.f32 %v868, %v1174
  %v1181 = vadd.f32 %v1177, %v694
  %v1182 = vadd.f32 %v1178, %v695
  %v1183 = vadd.f32 %v1179, %v696
  %v1184 = vadd.f32 %v1180, %v697
  %v1185 = vtanh.pop %v1181
  %v1186 = vtanh.pop %v1182
  %v1187 = vtanh.pop %v1183
  %v1188 = vtanh.pop %v1184
  %v1189 = vsub.f32 1.0, %v1057
  %v1190 = vsub.f32 1.0, %v1059
  %v1191 = vsub.f32 1.0, %v1061
  %v1192 = vsub.f32 1.0, %v1063
  %v1193 = vmul.f32 %v1189, %v682
  %v1194 = vmul.f32 %v1190, %v683
  %v1195 = vmul.f32 %v1191, %v684
  %v1196 = vmul.f32 %v1192, %v685
  %v1197 = vmul.f32 %v1057, %v1185
  %v1198 = vmul.f32 %v1059, %v1186
  %v1199 = vmul.f32 %v1061, %v1187
  %v1200 = vmul.f32 %v1063, %v1188
  %v1201 = vadd.f32 %v1193, %v1197
  %v1202 = vadd.f32 %v1194, %v1198
  %v1203 = vadd.f32 %v1195, %v1199
  %v1204 = vadd.f32 %v1196, %v1200
  %vm1205 = vcmask 130048
  %1206 = vst.msk [vmem:[%s11] sm:$0xff] %vm1205, %v1201
  %1207 = vst.msk [vmem:[%s11 + $0x8] sm:$0xff] %vm1205, %v1202
  %1208 = vst.msk [vmem:[%s11 + $0x10] sm:$0xff] %vm1205, %v1203
  %1209 = vst.msk [vmem:[%s11 + $0x18] sm:$0xff] %vm1205, %v1204
  // Predicated region
  $region46: #{tpu_custom_call.1} parent=0 // pred_check
    _
  $region47: #{tpu_custom_call.1} parent=0 // pred_check_branch
    %1211 = sbr.rel (0) target = $region49
  $region48: #{tpu_custom_call.1} parent=0 // pred_region
    _
  $region49: #{tpu_custom_call.1} parent=0 // pred_fallthru
    _
  // Predicated region
  $region50: #{tpu_custom_call.1} parent=0 // pred_check
    _
  $region51: #{tpu_custom_call.1} parent=0 // pred_check_branch
    %1213 = sbr.rel (0) target = $region53
  $region52: #{tpu_custom_call.1} parent=0 // pred_region
    _
  $region53: #{tpu_custom_call.1} parent=0 // pred_fallthru
    _

</llo_original>
